<compile_context>
chip_gen: v7x
topology: tpu7x:2x2x1
jax: 0.10.0
libtpu: 0.0.40
codegen_flags: <defaults>
</compile_context>

<pallas_src>
import jax
import jax.numpy as jnp
from jax.experimental import pallas as pl
from jax.experimental.pallas import tpu as pltpu

LEAKY_SLOPE = 0.01  # PyTorch nn.LeakyReLU default negative_slope


def _leaky_relu(h):
    return jnp.where(h > 0, h, LEAKY_SLOPE * h)


def _round_up(n, m):
    return ((n + m - 1) // m) * m


def qnetwork_kernel(x_ref, a_ref, w1x_ref, w1a_ref, b1_ref, w2_ref, b2_ref,
                    w3_ref, b3_ref, o_ref):
    """One batch tile of the 3-layer MLP. Weights are VMEM-resident."""
    x = x_ref[...]                                                    # (TB, obs)
    a = a_ref[...]                                                    # (TB, act)

    # Fused concat: cat([x, a]) @ W1 == x @ W1x + a @ W1a
    h = jnp.dot(x, w1x_ref[...], preferred_element_type=jnp.float32)  # (TB, 256)
    h = h + jnp.dot(a, w1a_ref[...], preferred_element_type=jnp.float32)
    h = _leaky_relu(h + b1_ref[...])

    h = jnp.dot(h, w2_ref[...], preferred_element_type=jnp.float32)   # (TB, 128)
    h = _leaky_relu(h + b2_ref[...])

    # Final width-1 layer as a lane reduction (XLU) instead of an N=1 matmul.
    q = jnp.sum(h * w3_ref[...], axis=-1, keepdims=True)              # (TB, 1)
    o_ref[...] = (q + b3_ref[0]).astype(o_ref.dtype)


def qnetwork_forward(x, a, params, *, tb=2048):
    """x: (B, obs_dim), a: (B, act_dim)  ->  (B, 1) float32."""
    w1x, w1a, b1, w2, b2, w3, b3 = params
    B, obs_dim = x.shape
    act_dim = a.shape[1]
    h1, h2 = w1x.shape[1], w2.shape[1]

    x = x.astype(jnp.float32)
    a = a.astype(jnp.float32)

    # Batch tile: as large as `tb` (8-aligned), but never bigger than needed.
    TB = min(tb, _round_up(B, 8))
    if B > 8:
        # v7x megacore: keep >= 2 batch tiles so ("parallel",) actually splits
        # work across the 2 TensorCores. No effect on v5e/v6e.
        TB = min(TB, _round_up((B + 1) // 2, 8))

    # No wrapper-side padding: Pallas handles the partial edge tile itself.
    grid = (pl.cdiv(B, TB),)

    d_in = obs_dim + act_dim
    weight_elems = d_in * h1 + h1 * h2 + h2 + h1 + h2 + 1
    cost = pl.CostEstimate(
        flops=2 * B * (d_in * h1 + h1 * h2 + h2),
        transcendentals=0,
        bytes_accessed=(B * (d_in + 1) + weight_elems) * 4,
    )

    const = lambda i: (0, 0)   # weights/biases: same block every grid step
    batch = lambda i: (i, 0)   # activations/output: stream over batch tiles

    out = pl.pallas_call(
        qnetwork_kernel,
        grid=grid,
        in_specs=[
            pl.BlockSpec((TB, obs_dim), batch),                  # x
            pl.BlockSpec((TB, act_dim), batch),                  # a
            pl.BlockSpec((obs_dim, h1), const),                  # w1x
            pl.BlockSpec((act_dim, h1), const),                  # w1a
            pl.BlockSpec((1, h1), const),                        # b1
            pl.BlockSpec((h1, h2), const),                       # w2
            pl.BlockSpec((1, h2), const),                        # b2
            pl.BlockSpec((1, h2), const),                        # w3 (row)
            pl.BlockSpec((1,), lambda i: (0,),
                         memory_space=pltpu.MemorySpace.SMEM),   # b3 scalar
        ],
        out_specs=pl.BlockSpec((TB, 1), batch),
        out_shape=jax.ShapeDtypeStruct((B, 1), jnp.float32),
        compiler_params=pltpu.CompilerParams(
            dimension_semantics=("parallel",),
            vmem_limit_bytes=32 * 1024 * 1024),
        cost_estimate=cost,
    )(x, a, w1x, w1a, b1, w2, b2, w3, b3)

    return out


def init_params(key, obs_dim, act_dim):
    """Deterministic synthetic params, nn.Linear-style init ranges.
    W1 is pre-split into W1x/W1a; all weights stored as [in, out]."""
    d_in = obs_dim + act_dim
    params = []

    # Layer 1: (d_in, 256) split row-wise into obs part and act part.
    kw, kb, key = jax.random.split(key, 3)
    bound = 1.0 / jnp.sqrt(d_in)
    w1 = jax.random.uniform(kw, (d_in, 256), jnp.float32, -bound, bound)
    b1 = jax.random.uniform(kb, (1, 256), jnp.float32, -bound, bound)
    params += [w1[:obs_dim], w1[obs_dim:], b1]

    # Layer 2: (256, 128)
    kw, kb, key = jax.random.split(key, 3)
    bound = 1.0 / jnp.sqrt(256)
    params += [jax.random.uniform(kw, (256, 128), jnp.float32, -bound, bound),
               jax.random.uniform(kb, (1, 128), jnp.float32, -bound, bound)]

    # Layer 3: stored as a (1, 128) row (used as a reduction) + (1,) bias.
    kw, kb, key = jax.random.split(key, 3)
    bound = 1.0 / jnp.sqrt(128)
    params += [jax.random.uniform(kw, (1, 128), jnp.float32, -bound, bound),
               jax.random.uniform(kb, (1,), jnp.float32, -bound, bound)]
    return tuple(params)


def qnetwork_ref(x, a, params):
    """Pure-JAX reference with the original concat semantics."""
    w1x, w1a, b1, w2, b2, w3, b3 = params
    xa = jnp.concatenate([x, a], axis=1)
    w1 = jnp.concatenate([w1x, w1a], axis=0)
    h = _leaky_relu(xa @ w1 + b1)
    h = _leaky_relu(h @ w2 + b2)
    return h @ w3.T + b3


if __name__ == "__main__":
    key = jax.random.PRNGKey(0)
    k_x, k_a, k_p, k_x2, k_a2 = jax.random.split(key, 5)

    OBS_DIM, ACT_DIM = 24, 8
    params = init_params(k_p, OBS_DIM, ACT_DIM)

    # Small-shape check (matches the toy spec shapes): single tile, grid=(1,).
    B = 8
    x = jax.random.normal(k_x, (B, OBS_DIM), jnp.float32)
    a = jax.random.normal(k_a, (B, ACT_DIM), jnp.float32)
    out = jax.block_until_ready(qnetwork_forward(x, a, params))
    ref = qnetwork_ref(x, a, params)
    assert out.shape == (B, 1), out.shape
    assert jnp.allclose(out, ref, atol=1e-4, rtol=1e-4), "mismatch vs reference (B=8)"

    # Larger ragged batch, default tile: exercises the v7x >=2-tile cap
    # (TB=152, grid=2) and the unpadded partial edge tile.
    B2 = 300
    x2 = jax.random.normal(k_x2, (B2, OBS_DIM), jnp.float32)
    a2 = jax.random.normal(k_a2, (B2, ACT_DIM), jnp.float32)
    out2 = jax.block_until_ready(qnetwork_forward(x2, a2, params))
    ref2 = qnetwork_ref(x2, a2, params)
    assert out2.shape == (B2, 1), out2.shape
    assert jnp.allclose(out2, ref2, atol=1e-4, rtol=1e-4), "mismatch (B=300, default tb)"

    # Same batch with a small explicit tile: multi-tile path (grid=3) + edge.
    out3 = jax.block_until_ready(qnetwork_forward(x2, a2, params, tb=128))
    assert out3.shape == (B2, 1), out3.shape
    assert jnp.allclose(out3, ref2, atol=1e-4, rtol=1e-4), "mismatch (B=300, tb=128)"

    print("KERNEL_OK")
</pallas_src>

<mosaic_0001>
module attributes {stable_mosaic.version = 11 : i64} {
  func.func @qnetwork_kernel(%arg0: i32, %arg1: memref<8x24xf32, #tpu.memory_space<vmem>>, %arg2: memref<8x8xf32, #tpu.memory_space<vmem>>, %arg3: memref<24x256xf32, #tpu.memory_space<vmem>>, %arg4: memref<8x256xf32, #tpu.memory_space<vmem>>, %arg5: memref<1x256xf32, #tpu.memory_space<vmem>>, %arg6: memref<256x128xf32, #tpu.memory_space<vmem>>, %arg7: memref<1x128xf32, #tpu.memory_space<vmem>>, %arg8: memref<1x128xf32, #tpu.memory_space<vmem>>, %arg9: memref<1xf32, #tpu.memory_space<smem>>, %arg10: memref<8x1xf32, #tpu.memory_space<vmem>>) attributes {dimension_semantics = [#tpu.dimension_semantics<parallel>], iteration_bounds = array<i64: 1>, scalar_prefetch = 0 : i64, scratch_operands = 0 : i64, tpu.core_type = #tpu.core_type<tc>, window_params = [{transform_indices = @transform_0, window_bounds = array<i64: 8, 24>}, {transform_indices = @transform_1, window_bounds = array<i64: 8, 8>}, {pipeline_mode = #tpu.pipeline_mode<synchronous>, transform_indices = @transform_2, window_bounds = array<i64: 24, 256>}, {pipeline_mode = #tpu.pipeline_mode<synchronous>, transform_indices = @transform_3, window_bounds = array<i64: 8, 256>}, {pipeline_mode = #tpu.pipeline_mode<synchronous>, transform_indices = @transform_4, window_bounds = array<i64: 1, 256>}, {pipeline_mode = #tpu.pipeline_mode<synchronous>, transform_indices = @transform_5, window_bounds = array<i64: 256, 128>}, {pipeline_mode = #tpu.pipeline_mode<synchronous>, transform_indices = @transform_6, window_bounds = array<i64: 1, 128>}, {pipeline_mode = #tpu.pipeline_mode<synchronous>, transform_indices = @transform_7, window_bounds = array<i64: 1, 128>}, {transform_indices = @transform_8, window_bounds = array<i64: 1>}, {transform_indices = @transform_9, window_bounds = array<i64: 8, 1>}]} {
    %c0 = arith.constant 0 : index
    %c0_0 = arith.constant 0 : index
    %0 = vector.load %arg1[%c0, %c0_0] : memref<8x24xf32, #tpu.memory_space<vmem>>, vector<8x24xf32>
    %c0_1 = arith.constant 0 : index
    %c0_2 = arith.constant 0 : index
    %1 = vector.load %arg2[%c0_1, %c0_2] : memref<8x8xf32, #tpu.memory_space<vmem>>, vector<8x8xf32>
    %c0_3 = arith.constant 0 : index
    %c0_4 = arith.constant 0 : index
    %2 = vector.load %arg3[%c0_3, %c0_4] : memref<24x256xf32, #tpu.memory_space<vmem>>, vector<24x256xf32>
    %cst = arith.constant dense<0.000000e+00> : vector<8x256xf32>
    %3 = tpu.matmul %0, %2, %cst {dimension_numbers = #tpu.dot_dimension_numbers<[1], [0], [0], [1], [0, 0, 1, 1], [], []>} : vector<8x24xf32>, vector<24x256xf32>, vector<8x256xf32> -> vector<8x256xf32>
    %c0_5 = arith.constant 0 : index
    %c0_6 = arith.constant 0 : index
    %4 = vector.load %arg4[%c0_5, %c0_6] : memref<8x256xf32, #tpu.memory_space<vmem>>, vector<8x256xf32>
    %cst_7 = arith.constant dense<0.000000e+00> : vector<8x256xf32>
    %5 = tpu.matmul %1, %4, %cst_7 {dimension_numbers = #tpu.dot_dimension_numbers<[1], [0], [0], [1], [0, 0, 1, 1], [], []>} : vector<8x8xf32>, vector<8x256xf32>, vector<8x256xf32> -> vector<8x256xf32>
    %6 = arith.addf %3, %5 : vector<8x256xf32>
    %c0_8 = arith.constant 0 : index
    %c0_9 = arith.constant 0 : index
    %7 = vector.load %arg5[%c0_8, %c0_9] : memref<1x256xf32, #tpu.memory_space<vmem>>, vector<1x256xf32>
    %8 = vector.broadcast %7 : vector<1x256xf32> to vector<8x256xf32>
    %9 = arith.addf %6, %8 : vector<8x256xf32>
    %cst_10 = arith.constant 0.000000e+00 : f32
    %10 = vector.broadcast %cst_10 : f32 to vector<8x256xf32>
    %11 = arith.cmpf ogt, %9, %10 : vector<8x256xf32>
    %cst_11 = arith.constant 0.00999999977 : f32
    %12 = vector.broadcast %cst_11 : f32 to vector<8x256xf32>
    %13 = arith.mulf %12, %9 : vector<8x256xf32>
    %14 = arith.select %11, %9, %13 : vector<8x256xi1>, vector<8x256xf32>
    %c0_12 = arith.constant 0 : index
    %c0_13 = arith.constant 0 : index
    %15 = vector.load %arg6[%c0_12, %c0_13] : memref<256x128xf32, #tpu.memory_space<vmem>>, vector<256x128xf32>
    %cst_14 = arith.constant dense<0.000000e+00> : vector<8x128xf32>
    %16 = tpu.matmul %14, %15, %cst_14 {dimension_numbers = #tpu.dot_dimension_numbers<[1], [0], [0], [1], [0, 0, 1, 1], [], []>} : vector<8x256xf32>, vector<256x128xf32>, vector<8x128xf32> -> vector<8x128xf32>
    %c0_15 = arith.constant 0 : index
    %c0_16 = arith.constant 0 : index
    %17 = vector.load %arg7[%c0_15, %c0_16] : memref<1x128xf32, #tpu.memory_space<vmem>>, vector<1x128xf32>
    %18 = vector.broadcast %17 : vector<1x128xf32> to vector<8x128xf32>
    %19 = arith.addf %16, %18 : vector<8x128xf32>
    %cst_17 = arith.constant 0.000000e+00 : f32
    %20 = vector.broadcast %cst_17 : f32 to vector<8x128xf32>
    %21 = arith.cmpf ogt, %19, %20 : vector<8x128xf32>
    %cst_18 = arith.constant 0.00999999977 : f32
    %22 = vector.broadcast %cst_18 : f32 to vector<8x128xf32>
    %23 = arith.mulf %22, %19 : vector<8x128xf32>
    %24 = arith.select %21, %19, %23 : vector<8x128xi1>, vector<8x128xf32>
    %c0_19 = arith.constant 0 : index
    %c0_20 = arith.constant 0 : index
    %25 = vector.load %arg8[%c0_19, %c0_20] : memref<1x128xf32, #tpu.memory_space<vmem>>, vector<1x128xf32>
    %26 = vector.broadcast %25 : vector<1x128xf32> to vector<8x128xf32>
    %27 = arith.mulf %24, %26 : vector<8x128xf32>
    %cst_21 = arith.constant dense<0.000000e+00> : vector<8xf32>
    %28 = vector.multi_reduction <add>, %27, %cst_21 [1] : vector<8x128xf32> to vector<8xf32>
    %29 = vector.shape_cast %28 : vector<8xf32> to vector<8x1xf32>
    %c0_22 = arith.constant 0 : index
    %30 = memref.load %arg9[%c0_22] : memref<1xf32, #tpu.memory_space<smem>>
    %31 = vector.broadcast %30 : f32 to vector<8x1xf32>
    %32 = arith.addf %29, %31 : vector<8x1xf32>
    %c0_23 = arith.constant 0 : index
    %c0_24 = arith.constant 0 : index
    %33 = vector.load %arg10[%c0_23, %c0_24] : memref<8x1xf32, #tpu.memory_space<vmem>>, vector<8x1xf32>
    tpu.vector_store %arg10[%c0_23, %c0_24], %32 {strides = array<i32>} : memref<8x1xf32, #tpu.memory_space<vmem>>, vector<8x1xf32>,
    return
  }
  func.func @transform_0(%arg0: i32) -> (i32, i32) {
    %c0_i32 = arith.constant 0 : i32
    %c0_i32_0 = arith.constant 0 : i32
    return %arg0, %c0_i32 : i32, i32
  }
  func.func @transform_1(%arg0: i32) -> (i32, i32) {
    %c0_i32 = arith.constant 0 : i32
    %c0_i32_0 = arith.constant 0 : i32
    return %arg0, %c0_i32 : i32, i32
  }
  func.func @transform_2(%arg0: i32) -> (i32, i32) {
    %c0_i32 = arith.constant 0 : i32
    %c0_i32_0 = arith.constant 0 : i32
    %c0_i32_1 = arith.constant 0 : i32
    return %c0_i32, %c0_i32_0 : i32, i32
  }
  func.func @transform_3(%arg0: i32) -> (i32, i32) {
    %c0_i32 = arith.constant 0 : i32
    %c0_i32_0 = arith.constant 0 : i32
    %c0_i32_1 = arith.constant 0 : i32
    return %c0_i32, %c0_i32_0 : i32, i32
  }
  func.func @transform_4(%arg0: i32) -> (i32, i32) {
    %c0_i32 = arith.constant 0 : i32
    %c0_i32_0 = arith.constant 0 : i32
    %c0_i32_1 = arith.constant 0 : i32
    return %c0_i32, %c0_i32_0 : i32, i32
  }
  func.func @transform_5(%arg0: i32) -> (i32, i32) {
    %c0_i32 = arith.constant 0 : i32
    %c0_i32_0 = arith.constant 0 : i32
    %c0_i32_1 = arith.constant 0 : i32
    return %c0_i32, %c0_i32_0 : i32, i32
  }
  func.func @transform_6(%arg0: i32) -> (i32, i32) {
    %c0_i32 = arith.constant 0 : i32
    %c0_i32_0 = arith.constant 0 : i32
    %c0_i32_1 = arith.constant 0 : i32
    return %c0_i32, %c0_i32_0 : i32, i32
  }
  func.func @transform_7(%arg0: i32) -> (i32, i32) {
    %c0_i32 = arith.constant 0 : i32
    %c0_i32_0 = arith.constant 0 : i32
    %c0_i32_1 = arith.constant 0 : i32
    return %c0_i32, %c0_i32_0 : i32, i32
  }
  func.func @transform_8(%arg0: i32) -> i32 {
    %c0_i32 = arith.constant 0 : i32
    %c0_i32_0 = arith.constant 0 : i32
    return %c0_i32 : i32
  }
  func.func @transform_9(%arg0: i32) -> (i32, i32) {
    %c0_i32 = arith.constant 0 : i32
    %c0_i32_0 = arith.constant 0 : i32
    return %arg0, %c0_i32 : i32, i32
  }
}

</mosaic_0001>

<llo_original>
// kernel: tpu_custom_call.1
$region0: #{tpu_custom_call.1}
  #allocation0 [shape = 'u32[]', space=smem, size = 0x4, offset = 0x4, fixed_abs, tag = 'smem constant byte address 0x4 - core index']
  #allocation1 [shape = 'u32[144,128]{1,0:T(1,128)}', space=vmem, size = 0x12000, scoped, tag = 'internal scratch']
  #allocation2 [shape = 'f32[1]{0:T(128)S(6)}', space=smem, size = 0x200, scoped, tag = 'scoped memory for tpu_custom_call.1']
  %s0 = inlined_call_operand.hbm [shape: f32[8,24], index: 0, kind: input, shape index: {}]
  %s1 = inlined_call_operand.hbm [shape: f32[8,8], index: 1, kind: input, shape index: {}]
  %s2 = inlined_call_operand.hbm [shape: f32[24,256], index: 2, kind: input, shape index: {}]
  %s3 = inlined_call_operand.hbm [shape: f32[8,256], index: 3, kind: input, shape index: {}]
  %s4 = inlined_call_operand.vmem [shape: f32[1,256], index: 4, kind: input, shape index: {}]
  %s5 = inlined_call_operand.hbm [shape: f32[256,128], index: 5, kind: input, shape index: {}]
  %s6 = inlined_call_operand.vmem [shape: f32[1,128], index: 6, kind: input, shape index: {}]
  %s7 = inlined_call_operand.vmem [shape: f32[1,128], index: 7, kind: input, shape index: {}]
  %s8 = inlined_call_operand.<no memory space> [shape: f32[1], index: 8, kind: input, shape index: {}]
  %s9 = inlined_call_operand.vmem [shape: f32[8,1], index: 9, kind: output, shape index: {}]
  %s10 = sld [smem:[#allocation0]]
  $region66: #{tpu_custom_call.1} parent=0
    _
  %s12 = ssub.s32 1, %s10
  %s13 = scalar_select 0, %s12, %s10
  %14 = sst [smem:[#allocation2]] %s8
  $region1: #{tpu_custom_call.1} parent=0
    #allocation3 [shape = 'u8[4096]{0}', space=vmem, size = 0x1000, scoped, tag = 'input window, operand 0, single buffered']
    #allocation4 [shape = 's32[1]{0}', space=sflag, size = 0x4, scoped, tag = 'scoped memory for tpu_custom_call.1']
    #allocation5 [shape = 'u8[4096]{0}', space=vmem, size = 0x1000, scoped, tag = 'input window, operand 1, single buffered']
    #allocation6 [shape = 's32[1]{0}', space=sflag, size = 0x4, scoped, tag = 'scoped memory for tpu_custom_call.1']
    #allocation7 [shape = 'u8[24576]{0}', space=vmem, size = 0x6000, scoped, tag = 'input window, operand 2, single buffered']
    #allocation8 [shape = 'u8[8192]{0}', space=vmem, size = 0x2000, scoped, tag = 'input window, operand 3, single buffered']
    #allocation9 [shape = 's32[1]{0}', space=sflag, size = 0x4, scoped, tag = 'scoped memory for tpu_custom_call.1']
    #allocation10 [shape = 'u8[131072]{0}', space=vmem, size = 0x20000, scoped, tag = 'input window, operand 5, single buffered']
    %15 = vsyncpa [#allocation4], 0
    %16 = vsyncpa [#allocation6], 0
    %17 = vsyncpa [#allocation9], 0
    // Predicated region
    $region2: #{tpu_custom_call.1} parent=1 // pred_check
      _
    $region3: #{tpu_custom_call.1} parent=1 // pred_check_branch
      %19 = sbr.rel (0) target = $region5
    $region4: #{tpu_custom_call.1} parent=1 // pred_region
      %s21 = ssub.s32 128, 128
      %22 = vsyncadd [#allocation4], %s21
      %s24 = sshll.u32 [#allocation3], 4
      %s25 = int_to_ptr.vmem [resolvable:$true] %s24
      %27 = dma.hbm_to_vmem [thread:$0]  %s0, 128, %s25, [#allocation4]
    $region5: #{tpu_custom_call.1} parent=1 // pred_fallthru
      _
    // Predicated region
    $region6: #{tpu_custom_call.1} parent=1 // pred_check
      _
    $region7: #{tpu_custom_call.1} parent=1 // pred_check_branch
      %29 = sbr.rel (0) target = $region9
    $region8: #{tpu_custom_call.1} parent=1 // pred_region
      %s31 = ssub.s32 128, 128
      %32 = vsyncadd [#allocation6], %s31
      %s34 = sshll.u32 [#allocation5], 4
      %s35 = int_to_ptr.vmem [resolvable:$true] %s34
      %37 = dma.hbm_to_vmem [thread:$0]  %s1, 128, %s35, [#allocation6]
    $region9: #{tpu_custom_call.1} parent=1 // pred_fallthru
      _
    // Predicated region
    $region10: #{tpu_custom_call.1} parent=1 // pred_check
      _
    $region11: #{tpu_custom_call.1} parent=1 // pred_check_branch
      %39 = sbr.rel (0) target = $region13
    $region12: #{tpu_custom_call.1} parent=1 // pred_region
      %s41 = ssub.s32 768, 768
      %42 = vsyncadd [#allocation6], %s41
      %s43 = sshll.u32 [#allocation7], 4
      %s44 = int_to_ptr.vmem [resolvable:$true] %s43
      %49 = dma.hbm_to_vmem [thread:$0]  %s2, 768, %s44, [#allocation6], 256, 256, 16
    $region13: #{tpu_custom_call.1} parent=1 // pred_fallthru
      _
    // Predicated region
    $region14: #{tpu_custom_call.1} parent=1 // pred_check
      _
    $region15: #{tpu_custom_call.1} parent=1 // pred_check_branch
      %51 = sbr.rel (0) target = $region17
    $region16: #{tpu_custom_call.1} parent=1 // pred_region
      %s53 = ssub.s32 256, 256
      %54 = vsyncadd [#allocation9], %s53
      %s56 = sshll.u32 [#allocation8], 4
      %s57 = int_to_ptr.vmem [resolvable:$true] %s56
      %59 = dma.hbm_to_vmem [thread:$0]  %s3, 256, %s57, [#allocation9]
    $region17: #{tpu_custom_call.1} parent=1 // pred_fallthru
      _
    // Predicated region
    $region18: #{tpu_custom_call.1} parent=1 // pred_check
      _
    $region19: #{tpu_custom_call.1} parent=1 // pred_check_branch
      %61 = sbr.rel (0) target = $region21
    $region20: #{tpu_custom_call.1} parent=1 // pred_region
      _
    $region21: #{tpu_custom_call.1} parent=1 // pred_fallthru
      _
    // Predicated region
    $region22: #{tpu_custom_call.1} parent=1 // pred_check
      _
    $region23: #{tpu_custom_call.1} parent=1 // pred_check_branch
      %63 = sbr.rel (0) target = $region25
    $region24: #{tpu_custom_call.1} parent=1 // pred_region
      %s65 = ssub.s32 4096, 4096
      %66 = vsyncadd [#allocation9], %s65
      %s67 = sshll.u32 [#allocation10], 4
      %s68 = int_to_ptr.vmem [resolvable:$true] %s67
      %73 = dma.hbm_to_vmem [thread:$0]  %s5, 4096, %s68, [#allocation9], 128, 128, 8
    $region25: #{tpu_custom_call.1} parent=1 // pred_fallthru
      _
    // Predicated region
    $region26: #{tpu_custom_call.1} parent=1 // pred_check
      _
    $region27: #{tpu_custom_call.1} parent=1 // pred_check_branch
      %75 = sbr.rel (0) target = $region29
    $region28: #{tpu_custom_call.1} parent=1 // pred_region
      _
    $region29: #{tpu_custom_call.1} parent=1 // pred_fallthru
      _
    // Predicated region
    $region30: #{tpu_custom_call.1} parent=1 // pred_check
      _
    $region31: #{tpu_custom_call.1} parent=1 // pred_check_branch
      %77 = sbr.rel (0) target = $region33
    $region32: #{tpu_custom_call.1} parent=1 // pred_region
      _
    $region33: #{tpu_custom_call.1} parent=1 // pred_fallthru
      _
    // Predicated region
    $region34: #{tpu_custom_call.1} parent=1 // pred_check
      _
    $region35: #{tpu_custom_call.1} parent=1 // pred_check_branch
      %79 = sbr.rel (0) target = $region37
    $region36: #{tpu_custom_call.1} parent=1 // pred_region
      _
    $region37: #{tpu_custom_call.1} parent=1 // pred_fallthru
      _
    // Predicated region
    $region38: #{tpu_custom_call.1} parent=1 // pred_check
      _
    $region39: #{tpu_custom_call.1} parent=1 // pred_check_branch
      %81 = sbr.rel (0) target = $region41
    $region40: #{tpu_custom_call.1} parent=1 // pred_region
      %82 = dma.done [#allocation4], 128
    $region41: #{tpu_custom_call.1} parent=1 // pred_fallthru
      _
    // Predicated region
    $region42: #{tpu_custom_call.1} parent=1 // pred_check
      _
    $region43: #{tpu_custom_call.1} parent=1 // pred_check_branch
      %84 = sbr.rel (0) target = $region45
    $region44: #{tpu_custom_call.1} parent=1 // pred_region
      %85 = dma.done [#allocation6], 128
    $region45: #{tpu_custom_call.1} parent=1 // pred_fallthru
      _
    // Predicated region
    $region46: #{tpu_custom_call.1} parent=1 // pred_check
      _
    $region47: #{tpu_custom_call.1} parent=1 // pred_check_branch
      %87 = sbr.rel (0) target = $region49
    $region48: #{tpu_custom_call.1} parent=1 // pred_region
      %88 = dma.done [#allocation6], 768
    $region49: #{tpu_custom_call.1} parent=1 // pred_fallthru
      _
    // Predicated region
    $region50: #{tpu_custom_call.1} parent=1 // pred_check
      _
    $region51: #{tpu_custom_call.1} parent=1 // pred_check_branch
      %90 = sbr.rel (0) target = $region53
    $region52: #{tpu_custom_call.1} parent=1 // pred_region
      %91 = dma.done [#allocation9], 256
    $region53: #{tpu_custom_call.1} parent=1 // pred_fallthru
      _
    // Predicated region
    $region54: #{tpu_custom_call.1} parent=1 // pred_check
      _
    $region55: #{tpu_custom_call.1} parent=1 // pred_check_branch
      %93 = sbr.rel (0) target = $region57
    $region56: #{tpu_custom_call.1} parent=1 // pred_region
      %94 = dma.done [#allocation9], 4096
    $region57: #{tpu_custom_call.1} parent=1 // pred_fallthru
      _
    %v95 = vld [vmem:[#allocation3] sm:$0xff]
    %v96 = vld [vmem:[#allocation5] sm:$0xff]
    %v97 = vld [vmem:[#allocation7] sm:$0xff]
    %v98 = vld [vmem:[#allocation7 + $0x8] sm:$0xff]
    %v99 = vld [vmem:[#allocation7 + $0x10] sm:$0xff]
    %v100 = vld [vmem:[#allocation7 + $0x18] sm:$0xff]
    %v101 = vld [vmem:[#allocation7 + $0x20] sm:$0xff]
    %v102 = vld [vmem:[#allocation7 + $0x28] sm:$0xff]
    %v103 = vld [vmem:[#allocation8] sm:$0xff]
    %v104 = vld [vmem:[#allocation8 + $0x8] sm:$0xff]
    %vm105 = vcmask 64512
    %v107 = vsel %vm105, %v96, 0
    %109 = vmatprep.subr.mxu0 %v104
    %110 = vmatpush1.msra.mxu0 %v103
    %111 = vmatprep.subr.mxu0 0.0
    %112 = vmatpush1.msra.mxu0 0.0
    %113 = vmatprep.subr.mxu0 0.0
    %114 = vmatpush1.msra.mxu0 0.0
    %115 = vmatprep.subr.mxu0 0.0
    %116 = vmatpush1.msra.mxu0 0.0
    %117 = vmatprep.subr.mxu0 0.0
    %118 = vmatpush1.msra.mxu0 0.0
    %119 = vmatprep.subr.mxu0 0.0
    %120 = vmatpush1.msra.mxu0 0.0
    %121 = vmatprep.subr.mxu0 0.0
    %122 = vmatpush1.msra.mxu0 0.0
    %123 = vmatprep.subr.mxu0 0.0
    %124 = vmatpush1.msra.mxu0 0.0
    %125 = vmatprep.subr.mxu0 0.0
    %126 = vmatpush1.msra.mxu0 0.0
    %127 = vmatprep.subr.mxu0 0.0
    %128 = vmatpush1.msra.mxu0 0.0
    %129 = vmatprep.subr.mxu0 0.0
    %130 = vmatpush1.msra.mxu0 0.0
    %131 = vmatprep.subr.mxu0 0.0
    %132 = vmatpush1.msra.mxu0 0.0
    %133 = vmatprep.subr.mxu0 0.0
    %134 = vmatpush1.msra.mxu0 0.0
    %135 = vmatprep.subr.mxu0 0.0
    %136 = vmatpush1.msra.mxu0 0.0
    %137 = vmatprep.subr.mxu0 0.0
    %138 = vmatpush1.msra.mxu0 0.0
    %139 = vmatprep.subr.mxu0 0.0
    %140 = vmatpush1.msra.mxu0 0.0
    %141 = vmatprep.subr.mxu0 0.0
    %142 = vmatpush1.msra.mxu0 0.0
    %143 = vmatprep.subr.mxu0 0.0
    %144 = vmatpush1.msra.mxu0 0.0
    %145 = vmatprep.subr.mxu0 0.0
    %146 = vmatpush1.msra.mxu0 0.0
    %147 = vmatprep.subr.mxu0 0.0
    %148 = vmatpush1.msra.mxu0 0.0
    %149 = vmatprep.subr.mxu0 0.0
    %150 = vmatpush1.msra.mxu0 0.0
    %151 = vmatprep.subr.mxu0 0.0
    %152 = vmatpush1.msra.mxu0 0.0
    %153 = vmatprep.subr.mxu0 0.0
    %154 = vmatpush1.msra.mxu0 0.0
    %155 = vmatprep.subr.mxu0 0.0
    %156 = vmatpush1.msra.mxu0 0.0
    %157 = vmatprep.subr.mxu0 0.0
    %158 = vmatpush1.msra.mxu0 0.0
    %159 = vmatprep.subr.mxu0 0.0
    %160 = vmatpush1.msra.mxu0 0.0
    %161 = vmatprep.subr.mxu0 0.0
    %162 = vmatpush1.msra.mxu0 0.0
    %163 = vmatprep.subr.mxu0 0.0
    %164 = vmatpush1.msra.mxu0 0.0
    %165 = vmatprep.subr.mxu0 0.0
    %166 = vmatpush1.msra.mxu0 0.0
    %167 = vmatprep.subr.mxu0 0.0
    %168 = vmatpush1.msra.mxu0 0.0
    %169 = vmatprep.subr.mxu0 0.0
    %170 = vmatpush1.msra.mxu0 0.0
    %171 = vmatprep.subr.mxu0 0.0
    %172 = vmatpush1.msra.mxu0 0.0
    %173 = vmatprep.mubr.f32.mxu0 0.0
    %174 = vmatmul.mubr.f32.gmra.mrb[0].mxu0 %v107
    %v175 = vpop.f32.mrb[0].mxu0
    %v176 = vadd.f32 0.0, %v175
    %v177 = vpop.f32.mrb[0].mxu0
    %v178 = vadd.f32 0.0, %v177
    %179 = vdwg.mxu0
    %vm180 = vcmask 195584
    %v182 = vsel %vm180, %v95, 0
    %184 = vmatprep.subr.mxu0 %v98
    %185 = vmatpush1.msra.mxu0 %v97
    %186 = vmatprep.subr.mxu0 %v100
    %187 = vmatpush1.msra.mxu0 %v99
    %188 = vmatprep.subr.mxu0 %v102
    %189 = vmatpush1.msra.mxu0 %v101
    %190 = vmatprep.subr.mxu0 0.0
    %191 = vmatpush1.msra.mxu0 0.0
    %192 = vmatprep.subr.mxu0 0.0
    %193 = vmatpush1.msra.mxu0 0.0
    %194 = vmatprep.subr.mxu0 0.0
    %195 = vmatpush1.msra.mxu0 0.0
    %196 = vmatprep.subr.mxu0 0.0
    %197 = vmatpush1.msra.mxu0 0.0
    %198 = vmatprep.subr.mxu0 0.0
    %199 = vmatpush1.msra.mxu0 0.0
    %200 = vmatprep.subr.mxu0 0.0
    %201 = vmatpush1.msra.mxu0 0.0
    %202 = vmatprep.subr.mxu0 0.0
    %203 = vmatpush1.msra.mxu0 0.0
    %204 = vmatprep.subr.mxu0 0.0
    %205 = vmatpush1.msra.mxu0 0.0
    %206 = vmatprep.subr.mxu0 0.0
    %207 = vmatpush1.msra.mxu0 0.0
    %208 = vmatprep.subr.mxu0 0.0
    %209 = vmatpush1.msra.mxu0 0.0
    %210 = vmatprep.subr.mxu0 0.0
    %211 = vmatpush1.msra.mxu0 0.0
    %212 = vmatprep.subr.mxu0 0.0
    %213 = vmatpush1.msra.mxu0 0.0
    %214 = vmatprep.subr.mxu0 0.0
    %215 = vmatpush1.msra.mxu0 0.0
    %216 = vmatprep.subr.mxu0 0.0
    %217 = vmatpush1.msra.mxu0 0.0
    %218 = vmatprep.subr.mxu0 0.0
    %219 = vmatpush1.msra.mxu0 0.0
    %220 = vmatprep.subr.mxu0 0.0
    %221 = vmatpush1.msra.mxu0 0.0
    %222 = vmatprep.subr.mxu0 0.0
    %223 = vmatpush1.msra.mxu0 0.0
    %224 = vmatprep.subr.mxu0 0.0
    %225 = vmatpush1.msra.mxu0 0.0
    %226 = vmatprep.subr.mxu0 0.0
    %227 = vmatpush1.msra.mxu0 0.0
    %228 = vmatprep.subr.mxu0 0.0
    %229 = vmatpush1.msra.mxu0 0.0
    %230 = vmatprep.subr.mxu0 0.0
    %231 = vmatpush1.msra.mxu0 0.0
    %232 = vmatprep.subr.mxu0 0.0
    %233 = vmatpush1.msra.mxu0 0.0
    %234 = vmatprep.subr.mxu0 0.0
    %235 = vmatpush1.msra.mxu0 0.0
    %236 = vmatprep.subr.mxu0 0.0
    %237 = vmatpush1.msra.mxu0 0.0
    %238 = vmatprep.subr.mxu0 0.0
    %239 = vmatpush1.msra.mxu0 0.0
    %240 = vmatprep.subr.mxu0 0.0
    %241 = vmatpush1.msra.mxu0 0.0
    %242 = vmatprep.subr.mxu0 0.0
    %243 = vmatpush1.msra.mxu0 0.0
    %244 = vmatprep.subr.mxu0 0.0
    %245 = vmatpush1.msra.mxu0 0.0
    %246 = vmatprep.subr.mxu0 0.0
    %247 = vmatpush1.msra.mxu0 0.0
    %248 = vmatprep.mubr.f32.mxu0 0.0
    %249 = vmatmul.mubr.f32.gmra.mrb[0].mxu0 %v182
    %v250 = vpop.f32.mrb[0].mxu0
    %v251 = vadd.f32 %v176, %v250
    %v252 = vpop.f32.mrb[0].mxu0
    %v253 = vadd.f32 %v178, %v252
    %254 = vdwg.mxu0
    %v255 = vld [vmem:[%s4] sm:$0x3]
    %v257 = vlaneseq
    %v258 = vshrl.u32 %v257, 7
    %v259 = vsub.s32 0, %v258
    %v260 = vrot.slane %v255, %v259
    %v261 = vlaneseq
    %v262 = vshrl.u32 %v261, 7
    %v263 = vsub.s32 1, %v262
    %v264 = vrot.slane %v255, %v263
    %v267 = vadd.f32 %v251, %v260
    %v268 = vadd.f32 %v253, %v264
    %vm269 = vcmp.gt.f32.partialorder %v267, 0.0
    %vm270 = vcmp.gt.f32.partialorder %v268, 0.0
    %v271 = vmul.f32 %v267, 0.01
    %v272 = vmul.f32 %v268, 0.01
    %v273 = vsel %vm269, %v267, %v271
    %v274 = vsel %vm270, %v268, %v272
    %v275 = vld [vmem:[#allocation10] sm:$0xff]
    %v276 = vld [vmem:[#allocation10 + $0x8] sm:$0xff]
    %v277 = vld [vmem:[#allocation10 + $0x10] sm:$0xff]
    %v278 = vld [vmem:[#allocation10 + $0x18] sm:$0xff]
    %v279 = vld [vmem:[#allocation10 + $0x20] sm:$0xff]
    %v280 = vld [vmem:[#allocation10 + $0x28] sm:$0xff]
    %v281 = vld [vmem:[#allocation10 + $0x30] sm:$0xff]
    %v282 = vld [vmem:[#allocation10 + $0x38] sm:$0xff]
    %v283 = vld [vmem:[#allocation10 + $0x40] sm:$0xff]
    %v284 = vld [vmem:[#allocation10 + $0x48] sm:$0xff]
    %v285 = vld [vmem:[#allocation10 + $0x50] sm:$0xff]
    %v286 = vld [vmem:[#allocation10 + $0x58] sm:$0xff]
    %v287 = vld [vmem:[#allocation10 + $0x60] sm:$0xff]
    %v288 = vld [vmem:[#allocation10 + $0x68] sm:$0xff]
    %v289 = vld [vmem:[#allocation10 + $0x70] sm:$0xff]
    %v290 = vld [vmem:[#allocation10 + $0x78] sm:$0xff]
    %v291 = vld [vmem:[#allocation10 + $0x80] sm:$0xff]
    %v292 = vld [vmem:[#allocation10 + $0x88] sm:$0xff]
    %v293 = vld [vmem:[#allocation10 + $0x90] sm:$0xff]
    %v294 = vld [vmem:[#allocation10 + $0x98] sm:$0xff]
    %v295 = vld [vmem:[#allocation10 + $0xa0] sm:$0xff]
    %v296 = vld [vmem:[#allocation10 + $0xa8] sm:$0xff]
    %v297 = vld [vmem:[#allocation10 + $0xb0] sm:$0xff]
    %v298 = vld [vmem:[#allocation10 + $0xb8] sm:$0xff]
    %v299 = vld [vmem:[#allocation10 + $0xc0] sm:$0xff]
    %v300 = vld [vmem:[#allocation10 + $0xc8] sm:$0xff]
    %v301 = vld [vmem:[#allocation10 + $0xd0] sm:$0xff]
    %v302 = vld [vmem:[#allocation10 + $0xd8] sm:$0xff]
    %v303 = vld [vmem:[#allocation10 + $0xe0] sm:$0xff]
    %v304 = vld [vmem:[#allocation10 + $0xe8] sm:$0xff]
    %v305 = vld [vmem:[#allocation10 + $0xf0] sm:$0xff]
    %v306 = vld [vmem:[#allocation10 + $0xf8] sm:$0xff]
    %v307 = vld [vmem:[%s6] sm:$0x1]
    %v309 = vlaneseq
    %v310 = vshrl.u32 %v309, 7
    %v311 = vsub.s32 0, %v310
    %v312 = vrot.slane %v307, %v311
    %314 = vmatprep.subr.mxu0 0.0
    %315 = vmatpush1.msra.mxu0 %v275
    %316 = vmatprep.subr.mxu0 0.0
    %317 = vmatpush1.msra.mxu0 %v276
    %318 = vmatprep.subr.mxu0 0.0
    %319 = vmatpush1.msra.mxu0 %v277
    %320 = vmatprep.subr.mxu0 0.0
    %321 = vmatpush1.msra.mxu0 %v278
    %322 = vmatprep.subr.mxu0 0.0
    %323 = vmatpush1.msra.mxu0 %v279
    %324 = vmatprep.subr.mxu0 0.0
    %325 = vmatpush1.msra.mxu0 %v280
    %326 = vmatprep.subr.mxu0 0.0
    %327 = vmatpush1.msra.mxu0 %v281
    %328 = vmatprep.subr.mxu0 0.0
    %329 = vmatpush1.msra.mxu0 %v282
    %330 = vmatprep.subr.mxu0 0.0
    %331 = vmatpush1.msra.mxu0 %v283
    %332 = vmatprep.subr.mxu0 0.0
    %333 = vmatpush1.msra.mxu0 %v284
    %334 = vmatprep.subr.mxu0 0.0
    %335 = vmatpush1.msra.mxu0 %v285
    %336 = vmatprep.subr.mxu0 0.0
    %337 = vmatpush1.msra.mxu0 %v286
    %338 = vmatprep.subr.mxu0 0.0
    %339 = vmatpush1.msra.mxu0 %v287
    %340 = vmatprep.subr.mxu0 0.0
    %341 = vmatpush1.msra.mxu0 %v288
    %342 = vmatprep.subr.mxu0 0.0
    %343 = vmatpush1.msra.mxu0 %v289
    %344 = vmatprep.subr.mxu0 0.0
    %345 = vmatpush1.msra.mxu0 %v290
    %346 = vmatprep.subr.mxu0 0.0
    %347 = vmatpush1.msra.mxu0 %v291
    %348 = vmatprep.subr.mxu0 0.0
    %349 = vmatpush1.msra.mxu0 %v292
    %350 = vmatprep.subr.mxu0 0.0
    %351 = vmatpush1.msra.mxu0 %v293
    %352 = vmatprep.subr.mxu0 0.0
    %353 = vmatpush1.msra.mxu0 %v294
    %354 = vmatprep.subr.mxu0 0.0
    %355 = vmatpush1.msra.mxu0 %v295
    %356 = vmatprep.subr.mxu0 0.0
    %357 = vmatpush1.msra.mxu0 %v296
    %358 = vmatprep.subr.mxu0 0.0
    %359 = vmatpush1.msra.mxu0 %v297
    %360 = vmatprep.subr.mxu0 0.0
    %361 = vmatpush1.msra.mxu0 %v298
    %362 = vmatprep.subr.mxu0 0.0
    %363 = vmatpush1.msra.mxu0 %v299
    %364 = vmatprep.subr.mxu0 0.0
    %365 = vmatpush1.msra.mxu0 %v300
    %366 = vmatprep.subr.mxu0 0.0
    %367 = vmatpush1.msra.mxu0 %v301
    %368 = vmatprep.subr.mxu0 0.0
    %369 = vmatpush1.msra.mxu0 %v302
    %370 = vmatprep.subr.mxu0 0.0
    %371 = vmatpush1.msra.mxu0 %v303
    %372 = vmatprep.subr.mxu0 0.0
    %373 = vmatpush1.msra.mxu0 %v304
    %374 = vmatprep.subr.mxu0 0.0
    %375 = vmatpush1.msra.mxu0 %v305
    %376 = vmatprep.subr.mxu0 0.0
    %377 = vmatpush1.msra.mxu0 %v306
    %378 = vmatprep.mubr.f32.mxu0 %v274
    %379 = vmatmul.mubr.f32.gmra.mrb[0].mxu0 %v273
    %v380 = vpop.f32.mrb[0].mxu0
    %v381 = vadd.f32 %v312, %v380
    %v382 = vpop.f32.mrb[0].mxu0
    %383 = vdwg.mxu0
    %vm384 = vcmp.gt.f32.partialorder %v381, 0.0
    %v385 = vmul.f32 %v381, 0.01
    %v386 = vsel %vm384, %v381, %v385
    %v387 = vld [vmem:[%s7] sm:$0x1]
    %v389 = vlaneseq
    %v390 = vshrl.u32 %v389, 7
    %v391 = vsub.s32 0, %v390
    %v392 = vrot.slane %v387, %v391
    %v394 = vmul.f32 %v386, %v392
    %395 = vadd.xlane.f32.xlu0 %v394
    %v396 = vpop.xlane.xlu0 %395
    %s397 = sld [smem:[#allocation2]]
    %v398 = vstv %s397
    %v399 = vadd.f32 %v396, %v398
    %vm400 = vcmask 7168
    %401 = vst.msk [vmem:[%s9] sm:$0xff] %vm400, %v399
    // Predicated region
    $region58: #{tpu_custom_call.1} parent=1 // pred_check
      _
    $region59: #{tpu_custom_call.1} parent=1 // pred_check_branch
      %403 = sbr.rel (0) target = $region61
    $region60: #{tpu_custom_call.1} parent=1 // pred_region
      _
    $region61: #{tpu_custom_call.1} parent=1 // pred_fallthru
      _
    // Predicated region
    $region62: #{tpu_custom_call.1} parent=1 // pred_check
      _
    $region63: #{tpu_custom_call.1} parent=1 // pred_check_branch
      %405 = sbr.rel (0) target = $region65
    $region64: #{tpu_custom_call.1} parent=1 // pred_region
      _
    $region65: #{tpu_custom_call.1} parent=1 // pred_fallthru
      _
    %406 = vsyncpa [#allocation4], 1
    %407 = vsyncpa [#allocation6], 1
    %408 = vsyncpa [#allocation9], 1

</llo_original>
